<compile_context>
chip_gen: v6e
topology: v6e:2x2x1
jax: 0.10.0
libtpu: 0.0.40
codegen_flags: <defaults>
</compile_context>

<pallas_src>
import jax
import jax.numpy as jnp
from jax.experimental import pallas as pl
from jax.experimental.pallas import tpu as pltpu


def _round_up(v: int, m: int) -> int:
    return ((v + m - 1) // m) * m


def _divisor_tile(dim: int, target: int, align: int) -> int:
    """Largest multiple of `align` that divides `dim` (dim is a multiple of `align`)
    and does not exceed max(target, align)."""
    best = align
    t = align
    limit = min(dim, max(target, align))
    while t <= limit:
        if dim % t == 0:
            best = t
        t += align
    return best


def _vmem_budget_bytes() -> int:
    """Per-core VMEM budget, generation aware (leave headroom for compiler scratch)."""
    cap = 128 << 20
    try:
        cap = int(getattr(pltpu.get_tpu_info(), "vmem_capacity_bytes", cap))
    except Exception:
        pass
    if cap <= (64 << 20):      # v7x-class: 64 MiB per TensorCore -> stay well below
        return 48 << 20
    return 100 << 20           # v5e / v6e: 128 MiB physical VMEM


# --------------------------------- kernels ---------------------------------

def _unembed_kernel_single(x_ref, w_ref, b_ref, o_ref):
    """K fits in one tile: no accumulator, bias folded into the single store."""
    o_ref[...] = (
        jnp.dot(x_ref[...], w_ref[...], preferred_element_type=jnp.float32)
        + b_ref[...].astype(jnp.float32)
    ).astype(o_ref.dtype)


def _unembed_kernel_multi_f32(x_ref, w_ref, b_ref, o_ref):
    """K tiled, f32 output: accumulate directly into the resident output block
    (no scratch); bias is the k == 0 initial value."""
    @pl.when(pl.program_id(2) == 0)
    def _():
        o_ref[...] = jnp.broadcast_to(b_ref[...].astype(jnp.float32), o_ref.shape)

    o_ref[...] += jnp.dot(x_ref[...], w_ref[...], preferred_element_type=jnp.float32)


def _unembed_kernel_multi_acc(x_ref, w_ref, b_ref, o_ref, acc_ref):
    """K tiled, non-f32 output: f32 scratch accumulator, bias at init, cast at end."""
    @pl.when(pl.program_id(2) == 0)
    def _():
        acc_ref[...] = jnp.broadcast_to(b_ref[...].astype(jnp.float32), acc_ref.shape)

    acc_ref[...] += jnp.dot(x_ref[...], w_ref[...], preferred_element_type=jnp.float32)

    @pl.when(pl.program_id(2) == pl.num_programs(2) - 1)
    def _():
        o_ref[...] = acc_ref[...].astype(o_ref.dtype)


# --------------------------------- wrapper ---------------------------------

def make_unembed(W_U, b_U, *, weight_dtype=None, out_dtype=None,
                 tm=None, tn=None, tk=None):
    """One-time weight preparation + tile selection.  Returns apply(x) -> logits.

    Weight cast / padding happens here exactly once (per review: do NOT repeat the
    full-W_U HBM pass on every forward call).
    """
    K, N = W_U.shape
    budget = _vmem_budget_bytes()
    if budget >= (96 << 20):                       # v5e / v6e: big tiles
        tm_tgt, tn_tgt, tk_tgt = 1024, 1024, 2048
    else:                                          # v7x: smaller per-TC VMEM
        tm_tgt, tn_tgt, tk_tgt = 512, 512, 2048

    # ---- tile geometry (static per weight set) ----
    Np = _round_up(N, 128)
    if tn is None:
        tn = _divisor_tile(Np, tn_tgt, 128)        # lane-dense, divides padded vocab
    assert tn % 128 == 0

    if tk is None:
        if K <= tk_tgt:
            tk = K                                 # full-K -> no accumulator path
        else:
            tk = _divisor_tile(_round_up(K, 128), tk_tgt, 128)
    else:
        assert tk == K or tk % 128 == 0, "tk must equal K or be a multiple of 128"
    Kp = _round_up(K, tk)
    kb = Kp // tk
    nb = pl.cdiv(N, tn)

    # ---- one-time weight prep (hoisted out of the per-call path) ----
    wd = jnp.dtype(weight_dtype) if weight_dtype is not None else jnp.dtype(W_U.dtype)
    W_p = W_U.astype(wd) if jnp.dtype(W_U.dtype) != wd else W_U
    if (Kp, Np) != (K, N):
        W_p = jnp.pad(W_p, ((0, Kp - K), (0, Np - N)))      # zeros: additive identity
    b_p = b_U.reshape(1, N).astype(jnp.float32)
    if Np != N:
        b_p = jnp.pad(b_p, ((0, 0), (0, Np - N)))
    wb = wd.itemsize

    def apply(x):
        assert x.ndim == 3 and x.shape[-1] == K, "expected [batch, position, d_model]"
        batch, pos = x.shape[0], x.shape[1]
        M = batch * pos
        odt = jnp.dtype(out_dtype) if out_dtype is not None else jnp.dtype(x.dtype)

        x2d = x.reshape(M, K)
        if jnp.dtype(x2d.dtype) != wd:
            x2d = x2d.astype(wd)                   # match MXU input dtype (cheap: x << W)
        if Kp != K:
            x2d = jnp.pad(x2d, ((0, 0), (0, Kp - K)))

        xb = wd.itemsize
        ob = odt.itemsize
        use_acc = (kb > 1) and (odt != jnp.dtype(jnp.float32))

        # ---- tm: largest that fits the VMEM budget (minimizes W_U re-streaming) ----
        fixed = 2 * tk * tn * wb + 2 * tn * 4                      # W tile (x2) + bias (x2)
        per_tm = 2 * tk * xb + 2 * tn * ob + (tn * 4 if use_acc else 0)
        if tm is not None:
            assert tm % 8 == 0, "tm must be a multiple of 8"
            tm_sel = tm
        else:
            if fixed >= budget:
                raise ValueError("W_U tile does not fit the VMEM budget; reduce tn/tk")
            tm_fit = ((budget - fixed) // per_tm) // 8 * 8
            tm_sel = max(8, min(tm_tgt, _round_up(M, 8), max(tm_fit, 8)))
        vmem_need = fixed + per_tm * tm_sel
        if vmem_need > budget:
            raise ValueError(
                f"tiles need {vmem_need >> 20} MiB VMEM but budget is {budget >> 20} MiB")
        vmem_limit = int(min(budget, max(vmem_need + (4 << 20), 32 << 20)))

        mb = pl.cdiv(M, tm_sel)

        # Vocab axis leading so a megacore split partitions N (disjoint W_U per core);
        # reduction axis (if any) innermost.
        if kb == 1:
            grid = (nb, mb)
            in_specs = [
                pl.BlockSpec((tm_sel, tk), lambda j, i: (i, 0)),   # x tile
                pl.BlockSpec((tk, tn), lambda j, i: (0, j)),       # W_U tile (reused over i)
                pl.BlockSpec((1, tn), lambda j, i: (0, j)),        # bias tile
            ]
            out_spec = pl.BlockSpec((tm_sel, tn), lambda j, i: (i, j))
            scratch = []
            kernel = _unembed_kernel_single
            semantics = ("parallel", "parallel")
        else:
            grid = (nb, mb, kb)
            in_specs = [
                pl.BlockSpec((tm_sel, tk), lambda j, i, k: (i, k)),
                pl.BlockSpec((tk, tn), lambda j, i, k: (k, j)),
                pl.BlockSpec((1, tn), lambda j, i, k: (0, j)),
            ]
            out_spec = pl.BlockSpec((tm_sel, tn), lambda j, i, k: (i, j))
            if use_acc:
                scratch = [pltpu.VMEM((tm_sel, tn), jnp.float32)]
                kernel = _unembed_kernel_multi_acc
            else:
                scratch = []
                kernel = _unembed_kernel_multi_f32
            semantics = ("parallel", "parallel", "arbitrary")

        w_streams = 1 if kb == 1 else mb
        cost = pl.CostEstimate(
            flops=2 * M * K * N,
            transcendentals=0,
            bytes_accessed=nb * M * Kp * xb + w_streams * Kp * Np * wb + M * N * ob,
        )

        # Output has the EXACT (M, N) shape: ragged boundary tiles are masked on store,
        # so there is no post-kernel slice/copy of the logits tensor.
        out = pl.pallas_call(
            kernel,
            out_shape=jax.ShapeDtypeStruct((M, N), odt),
            grid_spec=pltpu.PrefetchScalarGridSpec(
                num_scalar_prefetch=0,
                grid=grid,
                in_specs=in_specs,
                out_specs=out_spec,
                scratch_shapes=scratch,
            ),
            compiler_params=pltpu.CompilerParams(
                dimension_semantics=semantics,
                vmem_limit_bytes=vmem_limit,
            ),
            cost_estimate=cost,
        )(x2d, W_p, b_p)

        return out.reshape(batch, pos, N)

    return apply


def unembed(x, W_U, b_U, **kwargs):
    """One-shot convenience wrapper.  For repeated forward passes, build
    `apply = make_unembed(W_U, b_U, ...)` once so weight prep is not repeated."""
    return make_unembed(W_U, b_U, **kwargs)(x)


if __name__ == "__main__":
    key = jax.random.PRNGKey(0)
    k1, k2, k3, k4, k5, k6 = jax.random.split(key, 6)
    init_range = 0.02

    # --- Test 1: aligned shapes, single-K path, prep hoisted via make_unembed ---
    batch, seq, d_model, d_vocab = 2, 8, 32, 256
    x = jax.random.normal(k1, (batch, seq, d_model), dtype=jnp.float32)
    W_U = init_range * jax.random.normal(k2, (d_model, d_vocab), dtype=jnp.float32)
    b_U = jnp.zeros((d_vocab,), dtype=jnp.float32)

    apply_unembed = make_unembed(W_U, b_U)
    logits = apply_unembed(x)
    jax.block_until_ready(logits)
    ref = jnp.einsum("bpm,mv->bpv", x, W_U) + b_U
    assert logits.shape == (batch, seq, d_vocab)
    assert jnp.allclose(logits, ref, atol=1e-5, rtol=1e-5)

    # --- Test 2: ragged shapes (odd M, K, N) -> masked boundary tiles, no output slice ---
    b2, s2, dm2, dv2 = 2, 7, 48, 333
    x2 = jax.random.normal(k3, (b2, s2, dm2), dtype=jnp.float32)
    W2 = init_range * jax.random.normal(k4, (dm2, dv2), dtype=jnp.float32)
    bU2 = 0.01 * jnp.arange(dv2, dtype=jnp.float32)
    logits2 = unembed(x2, W2, bU2)
    jax.block_until_ready(logits2)
    ref2 = jnp.einsum("bpm,mv->bpv", x2, W2) + bU2
    assert logits2.shape == (b2, s2, dv2)
    assert jnp.allclose(logits2, ref2, atol=1e-5, rtol=1e-5)

    # --- Test 3: bf16 weight path (halves W_U HBM streaming), f32 accumulation ---
    logits3 = make_unembed(W_U, b_U, weight_dtype=jnp.bfloat16)(x)
    jax.block_until_ready(logits3)
    assert jnp.allclose(logits3, ref, atol=3e-2, rtol=3e-2)

    # --- Test 4: tiled-K path, f32 output -> accumulate directly into resident out block ---
    dm4, dv4 = 256, 256
    x4 = jax.random.normal(k5, (batch, seq, dm4), dtype=jnp.float32)
    W4 = init_range * jax.random.normal(k6, (dm4, dv4), dtype=jnp.float32)
    bU4 = 0.01 * jnp.arange(dv4, dtype=jnp.float32)
    logits4 = make_unembed(W4, bU4, tk=128)(x4)
    jax.block_until_ready(logits4)
    ref4 = jnp.einsum("bpm,mv->bpv", x4, W4) + bU4
    assert jnp.allclose(logits4, ref4, atol=1e-4, rtol=1e-4)

    # --- Test 5: tiled-K path with bf16 logits -> f32 scratch accumulator kernel ---
    logits5 = make_unembed(W4, bU4, tk=128, out_dtype=jnp.bfloat16)(x4)
    jax.block_until_ready(logits5)
    assert logits5.dtype == jnp.bfloat16
    assert jnp.allclose(logits5.astype(jnp.float32), ref4, atol=2e-2, rtol=2e-2)

    print("KERNEL_OK")
</pallas_src>

<mosaic_0001>
module attributes {stable_mosaic.version = 11 : i64} {
  func.func @_unembed_kernel_single(%arg0: i32, %arg1: i32, %arg2: memref<16x32xf32, #tpu.memory_space<vmem>>, %arg3: memref<32x256xf32, #tpu.memory_space<vmem>>, %arg4: memref<1x256xf32, #tpu.memory_space<vmem>>, %arg5: memref<16x256xf32, #tpu.memory_space<vmem>>) attributes {dimension_semantics = [#tpu.dimension_semantics<parallel>, #tpu.dimension_semantics<parallel>], iteration_bounds = array<i64: 1, 1>, scalar_prefetch = 0 : i64, scratch_operands = 0 : i64, tpu.core_type = #tpu.core_type<tc>, window_params = [{transform_indices = @transform_0, window_bounds = array<i64: 16, 32>}, {transform_indices = @transform_1, window_bounds = array<i64: 32, 256>}, {transform_indices = @transform_2, window_bounds = array<i64: 1, 256>}, {transform_indices = @transform_3, window_bounds = array<i64: 16, 256>}]} {
    %c0 = arith.constant 0 : index
    %c0_0 = arith.constant 0 : index
    %0 = vector.load %arg2[%c0, %c0_0] : memref<16x32xf32, #tpu.memory_space<vmem>>, vector<16x32xf32>
    %c0_1 = arith.constant 0 : index
    %c0_2 = arith.constant 0 : index
    %1 = vector.load %arg3[%c0_1, %c0_2] : memref<32x256xf32, #tpu.memory_space<vmem>>, vector<32x256xf32>
    %cst = arith.constant dense<0.000000e+00> : vector<16x256xf32>
    %2 = tpu.matmul %0, %1, %cst {dimension_numbers = #tpu.dot_dimension_numbers<[1], [0], [0], [1], [0, 0, 1, 1], [], []>} : vector<16x32xf32>, vector<32x256xf32>, vector<16x256xf32> -> vector<16x256xf32>
    %c0_3 = arith.constant 0 : index
    %c0_4 = arith.constant 0 : index
    %3 = vector.load %arg4[%c0_3, %c0_4] : memref<1x256xf32, #tpu.memory_space<vmem>>, vector<1x256xf32>
    %4 = vector.broadcast %3 : vector<1x256xf32> to vector<16x256xf32>
    %5 = arith.addf %2, %4 : vector<16x256xf32>
    %c0_5 = arith.constant 0 : index
    %c0_6 = arith.constant 0 : index
    %6 = vector.load %arg5[%c0_5, %c0_6] : memref<16x256xf32, #tpu.memory_space<vmem>>, vector<16x256xf32>
    tpu.vector_store %arg5[%c0_5, %c0_6], %5 {strides = array<i32>} : memref<16x256xf32, #tpu.memory_space<vmem>>, vector<16x256xf32>,
    return
  }
  func.func @transform_0(%arg0: i32, %arg1: i32) -> (i32, i32) {
    %c0_i32 = arith.constant 0 : i32
    %c0_i32_0 = arith.constant 0 : i32
    return %arg1, %c0_i32 : i32, i32
  }
  func.func @transform_1(%arg0: i32, %arg1: i32) -> (i32, i32) {
    %c0_i32 = arith.constant 0 : i32
    %c0_i32_0 = arith.constant 0 : i32
    return %c0_i32, %arg0 : i32, i32
  }
  func.func @transform_2(%arg0: i32, %arg1: i32) -> (i32, i32) {
    %c0_i32 = arith.constant 0 : i32
    %c0_i32_0 = arith.constant 0 : i32
    return %c0_i32, %arg0 : i32, i32
  }
  func.func @transform_3(%arg0: i32, %arg1: i32) -> (i32, i32) {
    %c0_i32 = arith.constant 0 : i32
    return %arg1, %arg0 : i32, i32
  }
}

</mosaic_0001>

<llo_original>
// kernel: tpu_custom_call.1
$region0: #{tpu_custom_call.1}
  #allocation0 [shape = 'u32[]', space=smem, size = 0x4, offset = 0x4, fixed_abs, tag = 'smem constant byte address 0x4 - core index']
  #allocation1 [shape = 'u32[144,128]{1,0:T(1,128)}', space=vmem, size = 0x12000, scoped, tag = 'internal scratch']
  %s0 = inlined_call_operand.hbm [shape: f32[16,32], index: 0, kind: input, shape index: {}]
  %s1 = inlined_call_operand.hbm [shape: f32[32,256], index: 1, kind: input, shape index: {}]
  %s2 = inlined_call_operand.vmem [shape: f32[1,256], index: 2, kind: input, shape index: {}]
  %s3 = inlined_call_operand.hbm [shape: f32[16,256], index: 3, kind: output, shape index: {}]
  %s4 = sld [smem:[#allocation0]]
  $region30: #{tpu_custom_call.1} parent=0
    _
  %s6 = ssub.s32 1, %s4
  %s7 = scalar_select 0, %s6, %s4
  $region1: #{tpu_custom_call.1} parent=0
    #allocation2 [shape = 'u8[8192]{0}', space=vmem, size = 0x2000, scoped, tag = 'input window, operand 0, single buffered']
    #allocation3 [shape = 's32[1]{0}', space=sflag, size = 0x4, scoped, tag = 'scoped memory for tpu_custom_call.1']
    #allocation4 [shape = 's32[1]{0}', space=sflag, size = 0x4, scoped, tag = 'scoped memory for tpu_custom_call.1']
    #allocation5 [shape = 'u8[32768]{0}', space=vmem, size = 0x8000, scoped, tag = 'input window, operand 1, single buffered']
    #allocation6 [shape = 's32[1]{0}', space=sflag, size = 0x4, scoped, tag = 'scoped memory for tpu_custom_call.1']
    #allocation7 [shape = 'u8[16384]{0}', space=vmem, size = 0x4000, scoped, tag = 'output window, operand 0, single buffered']
    %8 = vsyncpa [#allocation3], 0
    %9 = vsyncpa [#allocation6], 0
    %10 = vsyncpa [#allocation4], 0
    // Predicated region
    $region2: #{tpu_custom_call.1} parent=1 // pred_check
      _
    $region3: #{tpu_custom_call.1} parent=1 // pred_check_branch
      %12 = sbr.rel (0) target = $region5
    $region4: #{tpu_custom_call.1} parent=1 // pred_region
      %s14 = ssub.s32 256, 256
      %15 = vsyncadd [#allocation3], %s14
      %s16 = sshll.u32 [#allocation2], 4
      %s17 = int_to_ptr.vmem [resolvable:$true] %s16
      %22 = dma.hbm_to_vmem [thread:$0]  %s0, 256, %s17, [#allocation3], 128, 128, 8
    $region5: #{tpu_custom_call.1} parent=1 // pred_fallthru
      _
    // Predicated region
    $region6: #{tpu_custom_call.1} parent=1 // pred_check
      _
    $region7: #{tpu_custom_call.1} parent=1 // pred_check_branch
      %24 = sbr.rel (0) target = $region9
    $region8: #{tpu_custom_call.1} parent=1 // pred_region
      %s26 = ssub.s32 1024, 1024
      %27 = vsyncadd [#allocation6], %s26
      %s28 = sshll.u32 [#allocation5], 4
      %s29 = int_to_ptr.vmem [resolvable:$true] %s28
      %34 = dma.hbm_to_vmem [thread:$0]  %s1, 1024, %s29, [#allocation6], 256, 256, 16
    $region9: #{tpu_custom_call.1} parent=1 // pred_fallthru
      _
    // Predicated region
    $region10: #{tpu_custom_call.1} parent=1 // pred_check
      _
    $region11: #{tpu_custom_call.1} parent=1 // pred_check_branch
      %36 = sbr.rel (0) target = $region13
    $region12: #{tpu_custom_call.1} parent=1 // pred_region
      _
    $region13: #{tpu_custom_call.1} parent=1 // pred_fallthru
      _
    // Predicated region
    $region14: #{tpu_custom_call.1} parent=1 // pred_check
      _
    $region15: #{tpu_custom_call.1} parent=1 // pred_check_branch
      %38 = sbr.rel (0) target = $region17
    $region16: #{tpu_custom_call.1} parent=1 // pred_region
      %39 = dma.done [#allocation3], 256
    $region17: #{tpu_custom_call.1} parent=1 // pred_fallthru
      _
    // Predicated region
    $region18: #{tpu_custom_call.1} parent=1 // pred_check
      _
    $region19: #{tpu_custom_call.1} parent=1 // pred_check_branch
      %41 = sbr.rel (0) target = $region21
    $region20: #{tpu_custom_call.1} parent=1 // pred_region
      %42 = dma.done [#allocation6], 1024
    $region21: #{tpu_custom_call.1} parent=1 // pred_fallthru
      _
    %v43 = vld [vmem:[#allocation2] sm:$0xff]
    %v44 = vld [vmem:[#allocation2 + $0x8] sm:$0xff]
    %v45 = vld [vmem:[#allocation5] sm:$0xff]
    %v46 = vld [vmem:[#allocation5 + $0x8] sm:$0xff]
    %v47 = vld [vmem:[#allocation5 + $0x10] sm:$0xff]
    %v48 = vld [vmem:[#allocation5 + $0x18] sm:$0xff]
    %v49 = vld [vmem:[#allocation5 + $0x20] sm:$0xff]
    %v50 = vld [vmem:[#allocation5 + $0x28] sm:$0xff]
    %v51 = vld [vmem:[#allocation5 + $0x30] sm:$0xff]
    %v52 = vld [vmem:[#allocation5 + $0x38] sm:$0xff]
    %v53 = vld [vmem:[%s2] sm:$0x3]
    %v55 = vlaneseq
    %v56 = vshrl.u32 %v55, 7
    %v57 = vsub.s32 0, %v56
    %v58 = vrot.slane %v53, %v57
    %v59 = vlaneseq
    %v60 = vshrl.u32 %v59, 7
    %v61 = vsub.s32 1, %v60
    %v62 = vrot.slane %v53, %v61
    %vm65 = vcmask 261120
    %v67 = vsel %vm65, %v43, 0
    %v70 = vsel %vm65, %v44, 0
    %72 = vmatprep.subr.mxu0 0.0
    %73 = vmatpush1.msra.mxu0 0.0
    %74 = vmatprep.subr.mxu0 0.0
    %75 = vmatpush1.msra.mxu0 0.0
    %76 = vmatprep.subr.mxu0 0.0
    %77 = vmatpush1.msra.mxu0 0.0
    %78 = vmatprep.subr.mxu0 0.0
    %79 = vmatpush1.msra.mxu0 0.0
    %80 = vmatprep.subr.mxu0 0.0
    %81 = vmatpush1.msra.mxu0 0.0
    %82 = vmatprep.subr.mxu0 0.0
    %83 = vmatpush1.msra.mxu0 0.0
    %84 = vmatprep.subr.mxu0 0.0
    %85 = vmatpush1.msra.mxu0 0.0
    %86 = vmatprep.subr.mxu0 0.0
    %87 = vmatpush1.msra.mxu0 0.0
    %88 = vmatprep.subr.mxu0 0.0
    %89 = vmatpush1.msra.mxu0 0.0
    %90 = vmatprep.subr.mxu0 0.0
    %91 = vmatpush1.msra.mxu0 0.0
    %92 = vmatprep.subr.mxu0 0.0
    %93 = vmatpush1.msra.mxu0 0.0
    %94 = vmatprep.subr.mxu0 0.0
    %95 = vmatpush1.msra.mxu0 0.0
    %96 = vmatprep.subr.mxu0 %v52
    %97 = vmatpush1.msra.mxu0 %v51
    %98 = vmatprep.subr.mxu0 %v50
    %99 = vmatpush1.msra.mxu0 %v49
    %100 = vmatprep.subr.mxu0 %v48
    %101 = vmatpush1.msra.mxu0 %v47
    %102 = vmatprep.subr.mxu0 %v46
    %103 = vmatpush1.msra.mxu0 %v45
    %104 = vmatprep.subr.mxu0 0.0
    %105 = vmatpush2.msra.mxu0 0.0
    %106 = vmatprep.subr.mxu0 0.0
    %107 = vmatpush2.msra.mxu0 0.0
    %108 = vmatprep.subr.mxu0 0.0
    %109 = vmatpush2.msra.mxu0 0.0
    %110 = vmatprep.subr.mxu0 0.0
    %111 = vmatpush2.msra.mxu0 0.0
    %112 = vmatprep.subr.mxu0 0.0
    %113 = vmatpush2.msra.mxu0 0.0
    %114 = vmatprep.subr.mxu0 0.0
    %115 = vmatpush2.msra.mxu0 0.0
    %116 = vmatprep.subr.mxu0 0.0
    %117 = vmatpush2.msra.mxu0 0.0
    %118 = vmatprep.subr.mxu0 0.0
    %119 = vmatpush2.msra.mxu0 0.0
    %120 = vmatprep.subr.mxu0 0.0
    %121 = vmatpush2.msra.mxu0 0.0
    %122 = vmatprep.subr.mxu0 0.0
    %123 = vmatpush2.msra.mxu0 0.0
    %124 = vmatprep.subr.mxu0 0.0
    %125 = vmatpush2.msra.mxu0 0.0
    %126 = vmatprep.subr.mxu0 0.0
    %127 = vmatpush2.msra.mxu0 0.0
    %128 = vmatprep.subr.mxu0 0.0
    %129 = vmatpush2.msra.mxu0 0.0
    %130 = vmatprep.subr.mxu0 0.0
    %131 = vmatpush2.msra.mxu0 0.0
    %132 = vmatprep.subr.mxu0 0.0
    %133 = vmatpush2.msra.mxu0 0.0
    %134 = vmatprep.subr.mxu0 0.0
    %135 = vmatpush2.msra.mxu0 0.0
    %136 = vmatprep.mubr.f32.mxu0 0.0
    %137 = vmatmul.mubr.f32.gmra.mxu0 %v67
    %v138 = vpop.f32.mrf.mxu0
    %v139 = vadd.f32 %v58, %v138
    %v140 = vpop.f32.mrf.mxu0
    %v141 = vadd.f32 %v62, %v140
    %142 = vmatprep.mubr.f32.mxu0 0.0
    %143 = vmatmul.mubr.f32.gmra.mxu0 %v70
    %v144 = vpop.f32.mrf.mxu0
    %v145 = vadd.f32 %v58, %v144
    %v146 = vpop.f32.mrf.mxu0
    %v147 = vadd.f32 %v62, %v146
    %148 = vdwg.mxu0
    %149 = vst [vmem:[#allocation7] sm:$0xff] %v139
    %150 = vst [vmem:[#allocation7 + $0x8] sm:$0xff] %v141
    %151 = vst [vmem:[#allocation7 + $0x10] sm:$0xff] %v145
    %152 = vst [vmem:[#allocation7 + $0x18] sm:$0xff] %v147
    // Predicated region
    $region22: #{tpu_custom_call.1} parent=1 // pred_check
      _
    $region23: #{tpu_custom_call.1} parent=1 // pred_check_branch
      %154 = sbr.rel (0) target = $region25
    $region24: #{tpu_custom_call.1} parent=1 // pred_region
      %s156 = ssub.s32 512, 512
      %157 = vsyncadd [#allocation4], %s156
      %s158 = sshll.u32 [#allocation7], 4
      %s159 = int_to_ptr.vmem [resolvable:$true] %s158
      %164 = dma.vmem_to_hbm [thread:$0]  %s159, 512, %s3, [#allocation4], 256, 256, 16
    $region25: #{tpu_custom_call.1} parent=1 // pred_fallthru
      _
    // Predicated region
    $region26: #{tpu_custom_call.1} parent=1 // pred_check
      _
    $region27: #{tpu_custom_call.1} parent=1 // pred_check_branch
      %166 = sbr.rel (0) target = $region29
    $region28: #{tpu_custom_call.1} parent=1 // pred_region
      %167 = dma.done [#allocation4], 512
    $region29: #{tpu_custom_call.1} parent=1 // pred_fallthru
      _
    %168 = vsyncpa [#allocation3], 1
    %169 = vsyncpa [#allocation6], 1
    %170 = vsyncpa [#allocation4], 1

</llo_original>
